<compile_context>
chip_gen: v5e
topology: v5e:2x2
jax: 0.10.0
libtpu: 0.0.40
codegen_flags: <defaults>
</compile_context>

<pallas_src>
import functools

import jax
import jax.numpy as jnp
from jax import lax
from jax.experimental import pallas as pl
from jax.experimental.pallas import tpu as pltpu


def _conv_bn_leaky_kernel(x_ref, w_ref, shift_ref, o_ref, *,
                          KH, KW, Wp, hw_item, flat_item, P, hw_pad, leaky_slope):
    """One block = P packed (batch, row-tile) items.

    x_ref:     (Cin, P*flat_item)      bf16  P flattened padded row-windows, back to back in lanes
    w_ref:     (Cout, KH*KW*Cin)       bf16  conv weight, BN scale folded in, (kh,kw,cin) tap order
    shift_ref: (Cout, 1)               f32   folded BN shift
    o_ref:     (Cout, hw_pad)          f32   lane-dense (128-multiple) output block; the last
                                             hw_pad - P*hw_item lanes and the Wp-Wo wrap columns
                                             are garbage and get sliced off by the caller.
    """
    Cin = x_ref.shape[0]
    x = x_ref[...]                                         # (Cin, P*flat_item) bf16

    # In-register im2col: every tap of every item is a CONTIGUOUS lane slice of the row-major,
    # padded-width flattened item.  No VMEM scratch, no store->load serialization point.
    rows = []
    for kh in range(KH):
        for kw in range(KW):
            off = kh * Wp + kw
            pieces = [x[:, p * flat_item + off: p * flat_item + off + hw_item]
                      for p in range(P)]                   # each (Cin, hw_item)
            rows.append(pieces[0] if P == 1 else jnp.concatenate(pieces, axis=1))
    patch = rows[0] if len(rows) == 1 else jnp.concatenate(rows, axis=0)   # (K, P*hw_item)

    lane_pad = hw_pad - P * hw_item
    if lane_pad:                                           # pad lanes so the store is unmasked
        patch = jnp.concatenate(
            [patch, jnp.zeros((patch.shape[0], lane_pad), patch.dtype)], axis=1)

    # Single fused MXU matmul over all taps (bf16 operands, f32 accumulation).
    y = jnp.dot(w_ref[...], patch, preferred_element_type=jnp.float32)     # (Cout, hw_pad)

    # Fused BN shift + LeakyReLU epilogue (BN scale already folded into the weight).
    y = y + shift_ref[...]
    y = jnp.where(y > 0, y, leaky_slope * y)
    o_ref[...] = y.astype(o_ref.dtype)


def con2d_batch_leaky(x_nchw, weight_oihw, gamma, beta, running_mean, running_var,
                      *, stride=1, eps=1e-5, leaky_slope=0.1,
                      target_lanes=1152, out_dtype=jnp.float32):
    """Forward pass equivalent to Con2dBatchLeaky (eval-mode BN), bf16 compute / f32 accumulate.

    x_nchw:      (N, Cin, H, W)       float32
    weight_oihw: (Cout, Cin, KH, KW)  float32 (Conv2d weight, bias=False)
    returns:     (N, Cout, Ho, Wo)    out_dtype (default float32)
    """
    if stride != 1:
        raise NotImplementedError("Pallas Con2dBatchLeaky kernel currently supports stride=1 only.")

    N, Cin, H, W = x_nchw.shape
    Cout, _, KH, KW = weight_oihw.shape
    pad_h, pad_w = KH // 2, KW // 2                 # padding = int(kernel_size / 2)
    Ho = H + 2 * pad_h - KH + 1
    Wo = W + 2 * pad_w - KW + 1
    Wp = W + 2 * pad_w
    K = KH * KW * Cin

    # ---------------- block sizing ----------------
    # One "item" = tile_ho output rows of one image (full image for small H).  Pack P items along
    # the lane dim so each block carries ~target_lanes lanes, then pad to a multiple of 128.
    tile_ho = max(1, min(Ho, target_lanes // Wp))
    hw_item = tile_ho * Wp
    n_tiles = (Ho + tile_ho - 1) // tile_ho
    tile_rows_in = tile_ho + KH - 1                       # input rows per item (incl. halo)
    rows_needed = (n_tiles - 1) * tile_ho + tile_rows_in
    extra_rows = max(0, rows_needed - (H + 2 * pad_h))
    flat_item = tile_rows_in * Wp + (KW - 1)              # tail so the last tap slice is in-bounds

    items = N * n_tiles
    P = min(items, max(1, target_lanes // hw_item))       # items packed per block
    n_blocks = (items + P - 1) // P
    items_pad = n_blocks * P
    hw = P * hw_item
    hw_pad = ((hw + 127) // 128) * 128                    # lane-dense, unmasked output stores

    # ---------------- glue (plain JAX): layout + BN folding ----------------
    inv_std = 1.0 / jnp.sqrt(running_var.astype(jnp.float32) + eps)
    scale = gamma.astype(jnp.float32) * inv_std                           # (Cout,)
    shift = beta.astype(jnp.float32) - running_mean.astype(jnp.float32) * scale
    # 2-D weight (Cout, KH*KW*Cin), taps in (kh, kw, cin) order, BN scale folded in, bf16.
    w2d = jnp.transpose(weight_oihw.astype(jnp.float32), (0, 2, 3, 1)).reshape(Cout, K)
    w2d = (w2d * scale[:, None]).astype(jnp.bfloat16)
    shift2d = shift.reshape(Cout, 1)

    # Pad, gather row windows (identity when tile_ho == Ho), flatten each item row-major, pack P
    # items back-to-back along lanes, cast to bf16.
    x_pad = jnp.pad(x_nchw, ((0, 0), (0, 0),
                             (pad_h, pad_h + extra_rows), (pad_w, pad_w)))
    row_idx = (jnp.arange(n_tiles)[:, None] * tile_ho
               + jnp.arange(tile_rows_in)[None, :])                       # (n_tiles, rows_in)
    x_t = x_pad[:, :, row_idx, :]                                         # (N, Cin, n_tiles, rows, Wp)
    x_t = jnp.transpose(x_t, (0, 2, 1, 3, 4))                             # (N, n_tiles, Cin, rows, Wp)
    x_t = x_t.reshape(items, Cin, tile_rows_in * Wp)
    x_t = jnp.pad(x_t, ((0, items_pad - items), (0, 0), (0, KW - 1)))     # dummy items + tap tail
    x_t = x_t.reshape(n_blocks, P, Cin, flat_item)
    x_t = jnp.transpose(x_t, (0, 2, 1, 3)).reshape(n_blocks, Cin, P * flat_item)
    x_t = x_t.astype(jnp.bfloat16)

    kernel = functools.partial(_conv_bn_leaky_kernel, KH=KH, KW=KW, Wp=Wp,
                               hw_item=hw_item, flat_item=flat_item, P=P,
                               hw_pad=hw_pad, leaky_slope=leaky_slope)

    # VMEM budget: double-buffered input + output blocks + (resident) weights/shift.  Tens of KB
    # for this module; clamp the scoped limit at 48 MiB so the same code leaves headroom on v7x.
    out_bytes = jnp.dtype(out_dtype).itemsize
    block_bytes = (2 * (Cin * P * flat_item * 2 + Cout * hw_pad * out_bytes)
                   + Cout * K * 2 + Cout * 4)
    vmem_limit = int(min(max(8 * block_bytes, 32 * 1024 * 1024), 48 * 1024 * 1024))

    out = pl.pallas_call(
        kernel,
        out_shape=jax.ShapeDtypeStruct((n_blocks, Cout, hw_pad), out_dtype),
        grid_spec=pltpu.PrefetchScalarGridSpec(
            num_scalar_prefetch=0,
            grid=(n_blocks,),
            in_specs=[
                pl.BlockSpec((None, Cin, P * flat_item), lambda i: (i, 0, 0)),
                pl.BlockSpec((Cout, K), lambda i: (0, 0)),
                pl.BlockSpec((Cout, 1), lambda i: (0, 0)),
            ],
            out_specs=pl.BlockSpec((None, Cout, hw_pad), lambda i: (i, 0, 0)),
        ),
        compiler_params=pltpu.CompilerParams(
            dimension_semantics=("parallel",),
            vmem_limit_bytes=vmem_limit),
    )(x_t, w2d, shift2d)

    # Un-pack: (n_blocks, Cout, hw_pad) -> (N, Cout, Ho, Wo); drop lane padding, dummy items,
    # halo rows and Wp-Wo wrap columns.
    out = out[:, :, :hw].reshape(n_blocks, Cout, P, tile_ho, Wp)
    out = jnp.transpose(out, (0, 2, 1, 3, 4)).reshape(items_pad, Cout, tile_ho, Wp)
    out = out[:items].reshape(N, n_tiles, Cout, tile_ho, Wp)
    out = jnp.transpose(out, (0, 2, 1, 3, 4)).reshape(N, Cout, n_tiles * tile_ho, Wp)
    return out[:, :, :Ho, :Wo]


def _reference_bf16(x_nchw, weight_oihw, gamma, beta, running_mean, running_var,
                    *, stride=1, eps=1e-5, leaky_slope=0.1):
    """Reference with the SAME bf16 quantization of inputs/folded weights as the kernel."""
    Cout, _, KH, KW = weight_oihw.shape
    pad_h, pad_w = KH // 2, KW // 2
    inv_std = 1.0 / jnp.sqrt(running_var.astype(jnp.float32) + eps)
    scale = gamma.astype(jnp.float32) * inv_std
    shift = beta.astype(jnp.float32) - running_mean.astype(jnp.float32) * scale
    w_folded = (weight_oihw.astype(jnp.float32) * scale[:, None, None, None]).astype(jnp.bfloat16)
    y = lax.conv_general_dilated(
        x_nchw.astype(jnp.bfloat16), w_folded,
        window_strides=(stride, stride),
        padding=[(pad_h, pad_h), (pad_w, pad_w)],
        dimension_numbers=("NCHW", "OIHW", "NCHW"),
        preferred_element_type=jnp.float32)
    y = y + shift.reshape(1, -1, 1, 1)
    return jnp.where(y > 0, y, leaky_slope * y)


if __name__ == "__main__":
    # Module config: in_channels=4, out_channels=8, kernel_size=3, stride=1
    N, Cin, H, W = 2, 4, 16, 16
    Cout, KH, KW = 8, 3, 3
    stride = 1
    leaky_slope = 0.1

    key = jax.random.PRNGKey(0)
    k_x, k_w, k_g, k_b, k_m, k_v = jax.random.split(key, 6)

    x = jax.random.normal(k_x, (N, Cin, H, W), jnp.float32)
    weight = jax.random.normal(k_w, (Cout, Cin, KH, KW), jnp.float32) * 0.1
    gamma = 1.0 + 0.1 * jax.random.normal(k_g, (Cout,), jnp.float32)
    beta = 0.1 * jax.random.normal(k_b, (Cout,), jnp.float32)
    running_mean = 0.1 * jax.random.normal(k_m, (Cout,), jnp.float32)
    running_var = jnp.abs(1.0 + 0.1 * jax.random.normal(k_v, (Cout,), jnp.float32))

    out = con2d_batch_leaky(x, weight, gamma, beta, running_mean, running_var,
                            stride=stride, leaky_slope=leaky_slope)
    out = jax.block_until_ready(out)

    ref = _reference_bf16(x, weight, gamma, beta, running_mean, running_var,
                          stride=stride, leaky_slope=leaky_slope)
    assert out.shape == (N, Cout, H, W), out.shape
    max_err = float(jnp.max(jnp.abs(out - ref)))
    assert jnp.allclose(out, ref, atol=2e-3, rtol=2e-3), max_err

    print("KERNEL_OK")
</pallas_src>

<mosaic_0001>
module attributes {stable_mosaic.version = 11 : i64} {
  func.func @_conv_bn_leaky_kernel(%arg0: i32, %arg1: memref<1x4x652xbf16, #tpu.memory_space<vmem>>, %arg2: memref<8x36xbf16, #tpu.memory_space<vmem>>, %arg3: memref<8x1xf32, #tpu.memory_space<vmem>>, %arg4: memref<1x8x640xf32, #tpu.memory_space<vmem>>) attributes {dimension_semantics = [#tpu.dimension_semantics<parallel>], iteration_bounds = array<i64: 1>, scalar_prefetch = 0 : i64, scratch_operands = 0 : i64, tpu.core_type = #tpu.core_type<tc>, window_params = [{transform_indices = @transform_0, window_bounds = array<i64: 1, 4, 652>}, {pipeline_mode = #tpu.pipeline_mode<synchronous>, transform_indices = @transform_1, window_bounds = array<i64: 8, 36>}, {pipeline_mode = #tpu.pipeline_mode<synchronous>, transform_indices = @transform_2, window_bounds = array<i64: 8, 1>}, {transform_indices = @transform_3, window_bounds = array<i64: 1, 8, 640>}]} {
    %c0 = arith.constant 0 : index
    %c0_0 = arith.constant 0 : index
    %c0_1 = arith.constant 0 : index
    %0 = vector.load %arg1[%c0, %c0_0, %c0_1] : memref<1x4x652xbf16, #tpu.memory_space<vmem>>, vector<1x4x652xbf16>
    %1 = vector.shape_cast %0 : vector<1x4x652xbf16> to vector<4x652xbf16>
    %2 = vector.extract_strided_slice %1 {offsets = [0, 0], sizes = [4, 288], strides = [1, 1]} : vector<4x652xbf16> to vector<4x288xbf16>
    %3 = vector.extract_strided_slice %1 {offsets = [0, 326], sizes = [4, 288], strides = [1, 1]} : vector<4x652xbf16> to vector<4x288xbf16>
    %4 = tpu.concatenate %2, %3 in 1 : vector<4x288xbf16>, vector<4x288xbf16> -> vector<4x576xbf16>
    %5 = vector.extract_strided_slice %1 {offsets = [0, 1], sizes = [4, 288], strides = [1, 1]} : vector<4x652xbf16> to vector<4x288xbf16>
    %6 = vector.extract_strided_slice %1 {offsets = [0, 327], sizes = [4, 288], strides = [1, 1]} : vector<4x652xbf16> to vector<4x288xbf16>
    %7 = tpu.concatenate %5, %6 in 1 : vector<4x288xbf16>, vector<4x288xbf16> -> vector<4x576xbf16>
    %8 = vector.extract_strided_slice %1 {offsets = [0, 2], sizes = [4, 288], strides = [1, 1]} : vector<4x652xbf16> to vector<4x288xbf16>
    %9 = vector.extract_strided_slice %1 {offsets = [0, 328], sizes = [4, 288], strides = [1, 1]} : vector<4x652xbf16> to vector<4x288xbf16>
    %10 = tpu.concatenate %8, %9 in 1 : vector<4x288xbf16>, vector<4x288xbf16> -> vector<4x576xbf16>
    %11 = vector.extract_strided_slice %1 {offsets = [0, 18], sizes = [4, 288], strides = [1, 1]} : vector<4x652xbf16> to vector<4x288xbf16>
    %12 = vector.extract_strided_slice %1 {offsets = [0, 344], sizes = [4, 288], strides = [1, 1]} : vector<4x652xbf16> to vector<4x288xbf16>
    %13 = tpu.concatenate %11, %12 in 1 : vector<4x288xbf16>, vector<4x288xbf16> -> vector<4x576xbf16>
    %14 = vector.extract_strided_slice %1 {offsets = [0, 19], sizes = [4, 288], strides = [1, 1]} : vector<4x652xbf16> to vector<4x288xbf16>
    %15 = vector.extract_strided_slice %1 {offsets = [0, 345], sizes = [4, 288], strides = [1, 1]} : vector<4x652xbf16> to vector<4x288xbf16>
    %16 = tpu.concatenate %14, %15 in 1 : vector<4x288xbf16>, vector<4x288xbf16> -> vector<4x576xbf16>
    %17 = vector.extract_strided_slice %1 {offsets = [0, 20], sizes = [4, 288], strides = [1, 1]} : vector<4x652xbf16> to vector<4x288xbf16>
    %18 = vector.extract_strided_slice %1 {offsets = [0, 346], sizes = [4, 288], strides = [1, 1]} : vector<4x652xbf16> to vector<4x288xbf16>
    %19 = tpu.concatenate %17, %18 in 1 : vector<4x288xbf16>, vector<4x288xbf16> -> vector<4x576xbf16>
    %20 = vector.extract_strided_slice %1 {offsets = [0, 36], sizes = [4, 288], strides = [1, 1]} : vector<4x652xbf16> to vector<4x288xbf16>
    %21 = vector.extract_strided_slice %1 {offsets = [0, 362], sizes = [4, 288], strides = [1, 1]} : vector<4x652xbf16> to vector<4x288xbf16>
    %22 = tpu.concatenate %20, %21 in 1 : vector<4x288xbf16>, vector<4x288xbf16> -> vector<4x576xbf16>
    %23 = vector.extract_strided_slice %1 {offsets = [0, 37], sizes = [4, 288], strides = [1, 1]} : vector<4x652xbf16> to vector<4x288xbf16>
    %24 = vector.extract_strided_slice %1 {offsets = [0, 363], sizes = [4, 288], strides = [1, 1]} : vector<4x652xbf16> to vector<4x288xbf16>
    %25 = tpu.concatenate %23, %24 in 1 : vector<4x288xbf16>, vector<4x288xbf16> -> vector<4x576xbf16>
    %26 = vector.extract_strided_slice %1 {offsets = [0, 38], sizes = [4, 288], strides = [1, 1]} : vector<4x652xbf16> to vector<4x288xbf16>
    %27 = vector.extract_strided_slice %1 {offsets = [0, 364], sizes = [4, 288], strides = [1, 1]} : vector<4x652xbf16> to vector<4x288xbf16>
    %28 = tpu.concatenate %26, %27 in 1 : vector<4x288xbf16>, vector<4x288xbf16> -> vector<4x576xbf16>
    %29 = tpu.concatenate %4, %7, %10, %13, %16, %19, %22, %25, %28 in 0 : vector<4x576xbf16>, vector<4x576xbf16>, vector<4x576xbf16>, vector<4x576xbf16>, vector<4x576xbf16>, vector<4x576xbf16>, vector<4x576xbf16>, vector<4x576xbf16>, vector<4x576xbf16> -> vector<36x576xbf16>
    %cst = arith.constant 0.000000e+00 : bf16
    %30 = vector.broadcast %cst : bf16 to vector<36x64xbf16>
    %31 = tpu.concatenate %29, %30 in 1 : vector<36x576xbf16>, vector<36x64xbf16> -> vector<36x640xbf16>
    %c0_2 = arith.constant 0 : index
    %c0_3 = arith.constant 0 : index
    %32 = vector.load %arg2[%c0_2, %c0_3] : memref<8x36xbf16, #tpu.memory_space<vmem>>, vector<8x36xbf16>
    %cst_4 = arith.constant dense<0.000000e+00> : vector<8x640xf32>
    %33 = tpu.matmul %32, %31, %cst_4 {dimension_numbers = #tpu.dot_dimension_numbers<[1], [0], [0], [1], [0, 0, 1, 1], [], []>} : vector<8x36xbf16>, vector<36x640xbf16>, vector<8x640xf32> -> vector<8x640xf32>
    %c0_5 = arith.constant 0 : index
    %c0_6 = arith.constant 0 : index
    %34 = vector.load %arg3[%c0_5, %c0_6] : memref<8x1xf32, #tpu.memory_space<vmem>>, vector<8x1xf32>
    %35 = vector.broadcast %34 : vector<8x1xf32> to vector<8x640xf32>
    %36 = arith.addf %33, %35 : vector<8x640xf32>
    %cst_7 = arith.constant 0.000000e+00 : f32
    %37 = vector.broadcast %cst_7 : f32 to vector<8x640xf32>
    %38 = arith.cmpf ogt, %36, %37 : vector<8x640xf32>
    %cst_8 = arith.constant 1.000000e-01 : f32
    %39 = vector.broadcast %cst_8 : f32 to vector<8x640xf32>
    %40 = arith.mulf %39, %36 : vector<8x640xf32>
    %41 = arith.select %38, %36, %40 : vector<8x640xi1>, vector<8x640xf32>
    %c0_9 = arith.constant 0 : index
    %c0_10 = arith.constant 0 : index
    %c0_11 = arith.constant 0 : index
    %42 = vector.load %arg4[%c0_9, %c0_10, %c0_11] : memref<1x8x640xf32, #tpu.memory_space<vmem>>, vector<1x8x640xf32>
    %43 = vector.shape_cast %42 : vector<1x8x640xf32> to vector<8x640xf32>
    %44 = vector.shape_cast %41 : vector<8x640xf32> to vector<1x8x640xf32>
    tpu.vector_store %arg4[%c0_9, %c0_10, %c0_11], %44 {strides = array<i32>} : memref<1x8x640xf32, #tpu.memory_space<vmem>>, vector<1x8x640xf32>,
    return
  }
  func.func @transform_0(%arg0: i32) -> (i32, i32, i32) {
    %c0_i32 = arith.constant 0 : i32
    %c0_i32_0 = arith.constant 0 : i32
    %c0_i32_1 = arith.constant 0 : i32
    return %arg0, %c0_i32, %c0_i32_0 : i32, i32, i32
  }
  func.func @transform_1(%arg0: i32) -> (i32, i32) {
    %c0_i32 = arith.constant 0 : i32
    %c0_i32_0 = arith.constant 0 : i32
    %c0_i32_1 = arith.constant 0 : i32
    return %c0_i32, %c0_i32_0 : i32, i32
  }
  func.func @transform_2(%arg0: i32) -> (i32, i32) {
    %c0_i32 = arith.constant 0 : i32
    %c0_i32_0 = arith.constant 0 : i32
    %c0_i32_1 = arith.constant 0 : i32
    return %c0_i32, %c0_i32_0 : i32, i32
  }
  func.func @transform_3(%arg0: i32) -> (i32, i32, i32) {
    %c0_i32 = arith.constant 0 : i32
    %c0_i32_0 = arith.constant 0 : i32
    %c0_i32_1 = arith.constant 0 : i32
    return %arg0, %c0_i32, %c0_i32_0 : i32, i32, i32
  }
}

</mosaic_0001>

<llo_original>
// kernel: tpu_custom_call.1
$region0: #{tpu_custom_call.1}
  #allocation0 [shape = 'u32[]', space=smem, size = 0x4, offset = 0x4, fixed_abs, tag = 'smem constant byte address 0x4 - core index']
  #allocation1 [shape = 'u32[72,128]{1,0:T(1,128)}', space=vmem, size = 0x9000, scoped, tag = 'internal scratch']
  %s0 = inlined_call_operand.hbm [shape: bf16[1,4,652], index: 0, kind: input, shape index: {}]
  %s1 = inlined_call_operand.vmem [shape: bf16[8,36], index: 1, kind: input, shape index: {}]
  %s2 = inlined_call_operand.vmem [shape: f32[8,1], index: 2, kind: input, shape index: {}]
  %s3 = inlined_call_operand.hbm [shape: f32[1,8,640], index: 3, kind: output, shape index: {}]
  %s4 = sld [smem:[#allocation0]]
  $region26: #{tpu_custom_call.1} parent=0
    _
  %s6 = ssub.s32 1, %s4
  %s7 = scalar_select 0, %s6, %s4
  $region1: #{tpu_custom_call.1} parent=0
    #allocation2 [shape = 'u8[6144]{0}', space=vmem, size = 0x1800, scoped, tag = 'input window, operand 0, single buffered']
    #allocation3 [shape = 's32[1]{0}', space=sflag, size = 0x4, scoped, tag = 'scoped memory for tpu_custom_call.1']
    #allocation4 [shape = 's32[1]{0}', space=sflag, size = 0x4, scoped, tag = 'scoped memory for tpu_custom_call.1']
    #allocation5 [shape = 'u8[20480]{0}', space=vmem, size = 0x5000, scoped, tag = 'output window, operand 0, single buffered']
    %8 = vsyncpa [#allocation3], 0
    %9 = vsyncpa [#allocation4], 0
    // Predicated region
    $region2: #{tpu_custom_call.1} parent=1 // pred_check
      _
    $region3: #{tpu_custom_call.1} parent=1 // pred_check_branch
      %11 = sbr.rel (0) target = $region5
    $region4: #{tpu_custom_call.1} parent=1 // pred_region
      %13 = vsyncadd [#allocation3], 0
      %s15 = sshll.u32 %s0, 4
      %s16 = int_to_ptr.hbm [resolvable:$true] %s15
      %s17 = sshll.u32 [#allocation2], 4
      %s18 = int_to_ptr.vmem [resolvable:$true] %s17
      %20 = dma.hbm_to_vmem [thread:$0]  %s16, 192, %s18, [#allocation3]
    $region5: #{tpu_custom_call.1} parent=1 // pred_fallthru
      _
    // Predicated region
    $region6: #{tpu_custom_call.1} parent=1 // pred_check
      _
    $region7: #{tpu_custom_call.1} parent=1 // pred_check_branch
      %22 = sbr.rel (0) target = $region9
    $region8: #{tpu_custom_call.1} parent=1 // pred_region
      _
    $region9: #{tpu_custom_call.1} parent=1 // pred_fallthru
      _
    // Predicated region
    $region10: #{tpu_custom_call.1} parent=1 // pred_check
      _
    $region11: #{tpu_custom_call.1} parent=1 // pred_check_branch
      %24 = sbr.rel (0) target = $region13
    $region12: #{tpu_custom_call.1} parent=1 // pred_region
      _
    $region13: #{tpu_custom_call.1} parent=1 // pred_fallthru
      _
    // Predicated region
    $region14: #{tpu_custom_call.1} parent=1 // pred_check
      _
    $region15: #{tpu_custom_call.1} parent=1 // pred_check_branch
      %26 = sbr.rel (0) target = $region17
    $region16: #{tpu_custom_call.1} parent=1 // pred_region
      %28 = dma.done [#allocation3], 192
    $region17: #{tpu_custom_call.1} parent=1 // pred_fallthru
      _
    %v30 = vld [vmem:[#allocation2] sm:$0xff]
    %v31 = vld [vmem:[#allocation2 + $0x8] sm:$0xf]
    %33 = vst [vmem:[#allocation1] ss:$4 sm:$0xff] %v30
    %v34 = vld.sshfl [vmem:[#allocation1] sm:$0xff pattern:$0x73625140]
    %v35 = vld.sshfl [vmem:[#allocation1 + $0x8] sm:$0xff pattern:$0x73625140]
    %v36 = vld.sshfl [vmem:[#allocation1 + $0x10] sm:$0xff pattern:$0x73625140]
    %37 = vst [vmem:[#allocation1] ss:$4 sm:$0xff] %v30
    %s39 = scalar_lea.vmem [#allocation1], 32
    %40 = vst [vmem:[%s39] ss:$4 sm:$0xff] %v31
    %v41 = vld.sshfl [vmem:[#allocation1 + $0x10] sm:$0xff pattern:$0x73625140]
    %v43 = vld.sshfl [vmem:[#allocation1 + $0x18] sm:$0xff pattern:$0x73625140]
    %v45 = vld.sshfl [vmem:[#allocation1 + $0x20] sm:$0xff pattern:$0x73625140]
    %47 = vrot.lane.b32.xlu0 %v41, 90
    %v48 = vpop.permute.xlu0 %47
    %49 = vrot.lane.b32.xlu0 %v43, 90
    %v50 = vpop.permute.xlu0 %49
    %51 = vrot.lane.b32.xlu0 %v45, 90
    %v52 = vpop.permute.xlu0 %51
    %vm53 = vcmask 736256
    %v54 = vsel %vm53, %v48, %v50
    %v55 = vsel %vm53, %v50, %v52
    %vm56 = vcmask 261120
    %v58 = vsel %vm56, %v36, %v54
    %59 = vst [vmem:[#allocation1] ss:$4 sm:$0xff] %v30
    %v60 = vld.sshfl [vmem:[#allocation1] sm:$0xff pattern:$0x73625140]
    %v62 = vld.sshfl [vmem:[#allocation1 + $0x8] sm:$0xff pattern:$0x73625140]
    %v64 = vld.sshfl [vmem:[#allocation1 + $0x10] sm:$0xff pattern:$0x73625140]
    %66 = vrot.lane.b32.xlu0 %v60, 127
    %v67 = vpop.permute.xlu0 %66
    %68 = vrot.lane.b32.xlu0 %v62, 127
    %v69 = vpop.permute.xlu0 %68
    %70 = vrot.lane.b32.xlu0 %v64, 127
    %v71 = vpop.permute.xlu0 %70
    %vm72 = vcmask 1039360
    %v73 = vsel %vm72, %v67, %v69
    %v74 = vsel %vm72, %v69, %v71
    %75 = vst [vmem:[#allocation1] ss:$4 sm:$0xff] %v30
    %s76 = scalar_lea.vmem [#allocation1], 32
    %77 = vst [vmem:[%s76] ss:$4 sm:$0xff] %v31
    %v78 = vld.sshfl [vmem:[#allocation1 + $0x10] sm:$0xff pattern:$0x73625140]
    %v80 = vld.sshfl [vmem:[#allocation1 + $0x18] sm:$0xff pattern:$0x73625140]
    %v82 = vld.sshfl [vmem:[#allocation1 + $0x20] sm:$0xff pattern:$0x73625140]
    %84 = vrot.lane.b32.xlu0 %v78, 89
    %v85 = vpop.permute.xlu0 %84
    %86 = vrot.lane.b32.xlu0 %v80, 89
    %v87 = vpop.permute.xlu0 %86
    %88 = vrot.lane.b32.xlu0 %v82, 89
    %v89 = vpop.permute.xlu0 %88
    %vm90 = vcmask 728064
    %v91 = vsel %vm90, %v85, %v87
    %v92 = vsel %vm90, %v87, %v89
    %v95 = vsel %vm56, %v71, %v91
    %96 = vst [vmem:[#allocation1] ss:$4 sm:$0xff] %v30
    %v97 = vld.sshfl [vmem:[#allocation1] sm:$0xff pattern:$0x73625140]
    %v99 = vld.sshfl [vmem:[#allocation1 + $0x8] sm:$0xff pattern:$0x73625140]
    %v101 = vld.sshfl [vmem:[#allocation1 + $0x10] sm:$0xff pattern:$0x73625140]
    %103 = vrot.lane.b32.xlu0 %v97, 126
    %v104 = vpop.permute.xlu0 %103
    %105 = vrot.lane.b32.xlu0 %v99, 126
    %v106 = vpop.permute.xlu0 %105
    %107 = vrot.lane.b32.xlu0 %v101, 126
    %v108 = vpop.permute.xlu0 %107
    %vm109 = vcmask 1031168
    %v110 = vsel %vm109, %v104, %v106
    %v111 = vsel %vm109, %v106, %v108
    %112 = vst [vmem:[#allocation1] ss:$4 sm:$0xff] %v30
    %s113 = scalar_lea.vmem [#allocation1], 32
    %114 = vst [vmem:[%s113] ss:$4 sm:$0xff] %v31
    %v115 = vld.sshfl [vmem:[#allocation1 + $0x10] sm:$0xff pattern:$0x73625140]
    %v117 = vld.sshfl [vmem:[#allocation1 + $0x18] sm:$0xff pattern:$0x73625140]
    %v119 = vld.sshfl [vmem:[#allocation1 + $0x20] sm:$0xff pattern:$0x73625140]
    %121 = vrot.lane.b32.xlu0 %v115, 88
    %v122 = vpop.permute.xlu0 %121
    %123 = vrot.lane.b32.xlu0 %v117, 88
    %v124 = vpop.permute.xlu0 %123
    %125 = vrot.lane.b32.xlu0 %v119, 88
    %v126 = vpop.permute.xlu0 %125
    %vm127 = vcmask 719872
    %v128 = vsel %vm127, %v122, %v124
    %v129 = vsel %vm127, %v124, %v126
    %v132 = vsel %vm56, %v108, %v128
    %133 = vst [vmem:[#allocation1] ss:$4 sm:$0xff] %v30
    %v134 = vld.sshfl [vmem:[#allocation1] sm:$0xff pattern:$0x73625140]
    %v136 = vld.sshfl [vmem:[#allocation1 + $0x8] sm:$0xff pattern:$0x73625140]
    %v138 = vld.sshfl [vmem:[#allocation1 + $0x10] sm:$0xff pattern:$0x73625140]
    %140 = vrot.lane.b32.xlu0 %v134, 110
    %v141 = vpop.permute.xlu0 %140
    %142 = vrot.lane.b32.xlu0 %v136, 110
    %v143 = vpop.permute.xlu0 %142
    %144 = vrot.lane.b32.xlu0 %v138, 110
    %v145 = vpop.permute.xlu0 %144
    %vm146 = vcmask 900096
    %v147 = vsel %vm146, %v141, %v143
    %v148 = vsel %vm146, %v143, %v145
    %149 = vst [vmem:[#allocation1] ss:$4 sm:$0xff] %v30
    %s150 = scalar_lea.vmem [#allocation1], 32
    %151 = vst [vmem:[%s150] ss:$4 sm:$0xff] %v31
    %v152 = vld.sshfl [vmem:[#allocation1 + $0x10] sm:$0xff pattern:$0x73625140]
    %v154 = vld.sshfl [vmem:[#allocation1 + $0x18] sm:$0xff pattern:$0x73625140]
    %v156 = vld.sshfl [vmem:[#allocation1 + $0x20] sm:$0xff pattern:$0x73625140]
    %158 = vrot.lane.b32.xlu0 %v152, 72
    %v159 = vpop.permute.xlu0 %158
    %160 = vrot.lane.b32.xlu0 %v154, 72
    %v161 = vpop.permute.xlu0 %160
    %162 = vrot.lane.b32.xlu0 %v156, 72
    %v163 = vpop.permute.xlu0 %162
    %vm164 = vcmask 588800
    %v165 = vsel %vm164, %v159, %v161
    %v166 = vsel %vm164, %v161, %v163
    %v169 = vsel %vm56, %v145, %v165
    %170 = vst [vmem:[#allocation1] ss:$4 sm:$0xff] %v30
    %v171 = vld.sshfl [vmem:[#allocation1] sm:$0xff pattern:$0x73625140]
    %v173 = vld.sshfl [vmem:[#allocation1 + $0x8] sm:$0xff pattern:$0x73625140]
    %v175 = vld.sshfl [vmem:[#allocation1 + $0x10] sm:$0xff pattern:$0x73625140]
    %177 = vrot.lane.b32.xlu0 %v171, 109
    %v178 = vpop.permute.xlu0 %177
    %179 = vrot.lane.b32.xlu0 %v173, 109
    %v180 = vpop.permute.xlu0 %179
    %181 = vrot.lane.b32.xlu0 %v175, 109
    %v182 = vpop.permute.xlu0 %181
    %vm183 = vcmask 891904
    %v184 = vsel %vm183, %v178, %v180
    %v185 = vsel %vm183, %v180, %v182
    %186 = vst [vmem:[#allocation1] ss:$4 sm:$0xff] %v30
    %s187 = scalar_lea.vmem [#allocation1], 32
    %188 = vst [vmem:[%s187] ss:$4 sm:$0xff] %v31
    %v189 = vld.sshfl [vmem:[#allocation1 + $0x10] sm:$0xff pattern:$0x73625140]
    %v191 = vld.sshfl [vmem:[#allocation1 + $0x18] sm:$0xff pattern:$0x73625140]
    %v193 = vld.sshfl [vmem:[#allocation1 + $0x20] sm:$0xff pattern:$0x73625140]
    %195 = vrot.lane.b32.xlu0 %v189, 71
    %v196 = vpop.permute.xlu0 %195
    %197 = vrot.lane.b32.xlu0 %v191, 71
    %v198 = vpop.permute.xlu0 %197
    %199 = vrot.lane.b32.xlu0 %v193, 71
    %v200 = vpop.permute.xlu0 %199
    %vm201 = vcmask 580608
    %v202 = vsel %vm201, %v196, %v198
    %v203 = vsel %vm201, %v198, %v200
    %v206 = vsel %vm56, %v182, %v202
    %207 = vst [vmem:[#allocation1] ss:$4 sm:$0xff] %v30
    %v208 = vld.sshfl [vmem:[#allocation1] sm:$0xff pattern:$0x73625140]
    %v210 = vld.sshfl [vmem:[#allocation1 + $0x8] sm:$0xff pattern:$0x73625140]
    %v212 = vld.sshfl [vmem:[#allocation1 + $0x10] sm:$0xff pattern:$0x73625140]
    %214 = vrot.lane.b32.xlu0 %v208, 108
    %v215 = vpop.permute.xlu0 %214
    %216 = vrot.lane.b32.xlu0 %v210, 108
    %v217 = vpop.permute.xlu0 %216
    %218 = vrot.lane.b32.xlu0 %v212, 108
    %v219 = vpop.permute.xlu0 %218
    %vm220 = vcmask 883712
    %v221 = vsel %vm220, %v215, %v217
    %v222 = vsel %vm220, %v217, %v219
    %223 = vst [vmem:[#allocation1] ss:$4 sm:$0xff] %v30
    %s224 = scalar_lea.vmem [#allocation1], 32
    %225 = vst [vmem:[%s224] ss:$4 sm:$0xff] %v31
    %v226 = vld.sshfl [vmem:[#allocation1 + $0x10] sm:$0xff pattern:$0x73625140]
    %v228 = vld.sshfl [vmem:[#allocation1 + $0x18] sm:$0xff pattern:$0x73625140]
    %v230 = vld.sshfl [vmem:[#allocation1 + $0x20] sm:$0xff pattern:$0x73625140]
    %232 = vrot.lane.b32.xlu0 %v226, 70
    %v233 = vpop.permute.xlu0 %232
    %234 = vrot.lane.b32.xlu0 %v228, 70
    %v235 = vpop.permute.xlu0 %234
    %236 = vrot.lane.b32.xlu0 %v230, 70
    %v237 = vpop.permute.xlu0 %236
    %vm238 = vcmask 572416
    %v239 = vsel %vm238, %v233, %v235
    %v240 = vsel %vm238, %v235, %v237
    %v243 = vsel %vm56, %v219, %v239
    %244 = vst [vmem:[#allocation1] ss:$4 sm:$0xff] %v30
    %v245 = vld.sshfl [vmem:[#allocation1] sm:$0xff pattern:$0x73625140]
    %v247 = vld.sshfl [vmem:[#allocation1 + $0x8] sm:$0xff pattern:$0x73625140]
    %v249 = vld.sshfl [vmem:[#allocation1 + $0x10] sm:$0xff pattern:$0x73625140]
    %251 = vrot.lane.b32.xlu0 %v245, 92
    %v252 = vpop.permute.xlu0 %251
    %253 = vrot.lane.b32.xlu0 %v247, 92
    %v254 = vpop.permute.xlu0 %253
    %255 = vrot.lane.b32.xlu0 %v249, 92
    %v256 = vpop.permute.xlu0 %255
    %vm257 = vcmask 752640
    %v258 = vsel %vm257, %v252, %v254
    %v259 = vsel %vm257, %v254, %v256
    %260 = vst [vmem:[#allocation1] ss:$4 sm:$0xff] %v30
    %s261 = scalar_lea.vmem [#allocation1], 32
    %262 = vst [vmem:[%s261] ss:$4 sm:$0xff] %v31
    %v263 = vld.sshfl [vmem:[#allocation1 + $0x10] sm:$0xff pattern:$0x73625140]
    %v265 = vld.sshfl [vmem:[#allocation1 + $0x18] sm:$0xff pattern:$0x73625140]
    %v267 = vld.sshfl [vmem:[#allocation1 + $0x20] sm:$0xff pattern:$0x73625140]
    %v269 = vld.sshfl [vmem:[#allocation1 + $0x28] sm:$0xff pattern:$0x73625140]
    %271 = vrot.lane.b32.xlu0 %v263, 54
    %v272 = vpop.permute.xlu0 %271
    %273 = vrot.lane.b32.xlu0 %v265, 54
    %v274 = vpop.permute.xlu0 %273
    %275 = vrot.lane.b32.xlu0 %v267, 54
    %v276 = vpop.permute.xlu0 %275
    %277 = vrot.lane.b32.xlu0 %v269, 54
    %v278 = vpop.permute.xlu0 %277
    %vm279 = vcmask 441344
    %v280 = vsel %vm279, %v272, %v274
    %v281 = vsel %vm279, %v274, %v276
    %v282 = vsel %vm279, %v276, %v278
    %v285 = vsel %vm56, %v256, %v280
    %286 = vst [vmem:[#allocation1] ss:$4 sm:$0xff] %v30
    %v287 = vld.sshfl [vmem:[#allocation1] sm:$0xff pattern:$0x73625140]
    %v289 = vld.sshfl [vmem:[#allocation1 + $0x8] sm:$0xff pattern:$0x73625140]
    %v291 = vld.sshfl [vmem:[#allocation1 + $0x10] sm:$0xff pattern:$0x73625140]
    %293 = vrot.lane.b32.xlu0 %v287, 91
    %v294 = vpop.permute.xlu0 %293
    %295 = vrot.lane.b32.xlu0 %v289, 91
    %v296 = vpop.permute.xlu0 %295
    %297 = vrot.lane.b32.xlu0 %v291, 91
    %v298 = vpop.permute.xlu0 %297
    %vm299 = vcmask 744448
    %v300 = vsel %vm299, %v294, %v296
    %v301 = vsel %vm299, %v296, %v298
    %302 = vst [vmem:[#allocation1] ss:$4 sm:$0xff] %v30
    %s303 = scalar_lea.vmem [#allocation1], 32
    %304 = vst [vmem:[%s303] ss:$4 sm:$0xff] %v31
    %v305 = vld.sshfl [vmem:[#allocation1 + $0x10] sm:$0xff pattern:$0x73625140]
    %v307 = vld.sshfl [vmem:[#allocation1 + $0x18] sm:$0xff pattern:$0x73625140]
    %v309 = vld.sshfl [vmem:[#allocation1 + $0x20] sm:$0xff pattern:$0x73625140]
    %v311 = vld.sshfl [vmem:[#allocation1 + $0x28] sm:$0xff pattern:$0x73625140]
    %313 = vrot.lane.b32.xlu0 %v305, 53
    %v314 = vpop.permute.xlu0 %313
    %315 = vrot.lane.b32.xlu0 %v307, 53
    %v316 = vpop.permute.xlu0 %315
    %317 = vrot.lane.b32.xlu0 %v309, 53
    %v318 = vpop.permute.xlu0 %317
    %319 = vrot.lane.b32.xlu0 %v311, 53
    %v320 = vpop.permute.xlu0 %319
    %vm321 = vcmask 433152
    %v322 = vsel %vm321, %v314, %v316
    %v323 = vsel %vm321, %v316, %v318
    %v324 = vsel %vm321, %v318, %v320
    %v327 = vsel %vm56, %v298, %v322
    %328 = vst [vmem:[#allocation1] ss:$4 sm:$0xff] %v30
    %v329 = vld.sshfl [vmem:[#allocation1] sm:$0xff pattern:$0x73625140]
    %v331 = vld.sshfl [vmem:[#allocation1 + $0x8] sm:$0xff pattern:$0x73625140]
    %v333 = vld.sshfl [vmem:[#allocation1 + $0x10] sm:$0xff pattern:$0x73625140]
    %335 = vrot.lane.b32.xlu0 %v329, 90
    %v336 = vpop.permute.xlu0 %335
    %337 = vrot.lane.b32.xlu0 %v331, 90
    %v338 = vpop.permute.xlu0 %337
    %339 = vrot.lane.b32.xlu0 %v333, 90
    %v340 = vpop.permute.xlu0 %339
    %v341 = vsel %vm53, %v336, %v338
    %v342 = vsel %vm53, %v338, %v340
    %343 = vst [vmem:[#allocation1] ss:$4 sm:$0xff] %v30
    %s344 = scalar_lea.vmem [#allocation1], 32
    %345 = vst [vmem:[%s344] ss:$4 sm:$0xff] %v31
    %v346 = vld.sshfl [vmem:[#allocation1 + $0x10] sm:$0xff pattern:$0x73625140]
    %v348 = vld.sshfl [vmem:[#allocation1 + $0x18] sm:$0xff pattern:$0x73625140]
    %v350 = vld.sshfl [vmem:[#allocation1 + $0x20] sm:$0xff pattern:$0x73625140]
    %v352 = vld.sshfl [vmem:[#allocation1 + $0x28] sm:$0xff pattern:$0x73625140]
    %354 = vrot.lane.b32.xlu0 %v346, 52
    %v355 = vpop.permute.xlu0 %354
    %356 = vrot.lane.b32.xlu0 %v348, 52
    %v357 = vpop.permute.xlu0 %356
    %358 = vrot.lane.b32.xlu0 %v350, 52
    %v359 = vpop.permute.xlu0 %358
    %360 = vrot.lane.b32.xlu0 %v352, 52
    %v361 = vpop.permute.xlu0 %360
    %vm362 = vcmask 424960
    %v363 = vsel %vm362, %v355, %v357
    %v364 = vsel %vm362, %v357, %v359
    %v365 = vsel %vm362, %v359, %v361
    %v368 = vsel %vm56, %v340, %v363
    %v370 = vrot.slane %v73, 6
    %v371 = vrot.slane %v74, 6
    %v372 = vrot.slane %v95, 6
    %v373 = vrot.slane %v92, 6
    %v374 = vrot.slane %v89, 6
    %v376 = vrot.slane %v110, 4
    %v377 = vrot.slane %v111, 4
    %v378 = vrot.slane %v132, 4
    %v379 = vrot.slane %v129, 4
    %v380 = vrot.slane %v126, 4
    %v382 = vrot.slane %v147, 2
    %v383 = vrot.slane %v148, 2
    %v384 = vrot.slane %v169, 2
    %v385 = vrot.slane %v166, 2
    %v386 = vrot.slane %v163, 2
    %v388 = vrot.slane %v221, 6
    %v389 = vrot.slane %v222, 6
    %v390 = vrot.slane %v243, 6
    %v391 = vrot.slane %v240, 6
    %v392 = vrot.slane %v237, 6
    %v394 = vrot.slane %v258, 4
    %v395 = vrot.slane %v259, 4
    %v396 = vrot.slane %v285, 4
    %v397 = vrot.slane %v281, 4
    %v398 = vrot.slane %v282, 4
    %v400 = vrot.slane %v300, 2
    %v401 = vrot.slane %v301, 2
    %v402 = vrot.slane %v327, 2
    %v403 = vrot.slane %v323, 2
    %v404 = vrot.slane %v324, 2
    %vm405 = vcmask 1041408
    %v407 = vsel %vm405, %v34, %v370
    %v409 = vsel %vm405, %v35, %v371
    %v411 = vsel %vm405, %v58, %v372
    %v414 = vsel %vm405, %v55, %v373
    %v417 = vsel %vm405, %v52, %v374
    %vm418 = vcmask 1043456
    %v420 = vsel %vm418, %v407, %v376
    %v422 = vsel %vm418, %v409, %v377
    %v424 = vsel %vm418, %v411, %v378
    %v426 = vsel %vm418, %v414, %v379
    %v428 = vsel %vm418, %v417, %v380
    %vm429 = vcmask 1045504
    %v431 = vsel %vm429, %v420, %v382
    %v434 = vsel %vm429, %v422, %v383
    %v437 = vsel %vm429, %v424, %v384
    %v440 = vsel %vm429, %v426, %v385
    %v443 = vsel %vm429, %v428, %v386
    %v446 = vsel %vm405, %v184, %v388
    %v449 = vsel %vm405, %v185, %v389
    %v451 = vsel %vm405, %v206, %v390
    %v454 = vsel %vm405, %v203, %v391
    %v457 = vsel %vm405, %v200, %v392
    %v459 = vsel %vm418, %v446, %v394
    %v461 = vsel %vm418, %v449, %v395
    %v463 = vsel %vm418, %v451, %v396
    %v465 = vsel %vm418, %v454, %v397
    %v467 = vsel %vm418, %v457, %v398
    %v469 = vsel %vm429, %v459, %v400
    %v472 = vsel %vm429, %v461, %v401
    %v475 = vsel %vm429, %v463, %v402
    %v478 = vsel %vm429, %v465, %v403
    %v481 = vsel %vm429, %v467, %v404
    %vm482 = vcmask 523264
    %v484 = vsel %vm482, %v443, 0
    %v486 = vsel %vm482, %v481, 0
    %v489 = vsel %vm482, %v365, 0
    %v490 = vld [vmem:[%s1] sm:$0xf]
    %v491 = vld [vmem:[%s2] sm:$0xff]
    %493 = vset.pattern.permute.xlu0 0
    %494 = vperm.xlu0 %493, %v491
    %v495 = vpop.permute.xlu0 %494
    %vm497 = vcmask 293888
    %v499 = vsel %vm497, %v490, 0
    %v502 = vsel %vm405, %v341, 0
    %v505 = vsel %vm405, %v342, 0
    %v507 = vsel %vm405, %v368, 0
    %v510 = vsel %vm405, %v364, 0
    %v512 = vsel %vm405, %v489, 0
    %514 = vmatpush.bf16.msra.mxu0 0
    %515 = vmatpush.bf16.msra.mxu0 0
    %516 = vmatpush.bf16.msra.mxu0 0
    %517 = vmatpush.bf16.msra.mxu0 0
    %518 = vmatpush.bf16.msra.mxu0 0
    %519 = vmatpush.bf16.msra.mxu0 %v502
    %520 = vmatpush.bf16.msra.mxu0 %v469
    %521 = vmatpush.bf16.msra.mxu0 %v431
    %522 = vmatmul.bf16.gmra.mxu0 %v499
    %v523 = vpop.f32.mrf.mxu0
    %v524 = vadd.f32 %v495, %v523
    %v525 = vpop.f32.mrf.mxu0
    %526 = vdwg.mxu0
    %527 = vmatpush.bf16.msra.mxu0 0
    %528 = vmatpush.bf16.msra.mxu0 0
    %529 = vmatpush.bf16.msra.mxu0 0
    %530 = vmatpush.bf16.msra.mxu0 0
    %531 = vmatpush.bf16.msra.mxu0 0
    %532 = vmatpush.bf16.msra.mxu0 %v505
    %533 = vmatpush.bf16.msra.mxu0 %v472
    %534 = vmatpush.bf16.msra.mxu0 %v434
    %535 = vmatmul.bf16.gmra.mxu0 %v499
    %v536 = vpop.f32.mrf.mxu0
    %v537 = vadd.f32 %v495, %v536
    %v538 = vpop.f32.mrf.mxu0
    %539 = vdwg.mxu0
    %540 = vmatpush.bf16.msra.mxu0 0
    %541 = vmatpush.bf16.msra.mxu0 0
    %542 = vmatpush.bf16.msra.mxu0 0
    %543 = vmatpush.bf16.msra.mxu0 0
    %544 = vmatpush.bf16.msra.mxu0 0
    %545 = vmatpush.bf16.msra.mxu0 %v507
    %546 = vmatpush.bf16.msra.mxu0 %v475
    %547 = vmatpush.bf16.msra.mxu0 %v437
    %548 = vmatmul.bf16.gmra.mxu0 %v499
    %v549 = vpop.f32.mrf.mxu0
    %v550 = vadd.f32 %v495, %v549
    %v551 = vpop.f32.mrf.mxu0
    %552 = vdwg.mxu0
    %553 = vmatpush.bf16.msra.mxu0 0
    %554 = vmatpush.bf16.msra.mxu0 0
    %555 = vmatpush.bf16.msra.mxu0 0
    %556 = vmatpush.bf16.msra.mxu0 0
    %557 = vmatpush.bf16.msra.mxu0 0
    %558 = vmatpush.bf16.msra.mxu0 %v510
    %559 = vmatpush.bf16.msra.mxu0 %v478
    %560 = vmatpush.bf16.msra.mxu0 %v440
    %561 = vmatmul.bf16.gmra.mxu0 %v499
    %v562 = vpop.f32.mrf.mxu0
    %v563 = vadd.f32 %v495, %v562
    %v564 = vpop.f32.mrf.mxu0
    %565 = vdwg.mxu0
    %566 = vmatpush.bf16.msra.mxu0 0
    %567 = vmatpush.bf16.msra.mxu0 0
    %568 = vmatpush.bf16.msra.mxu0 0
    %569 = vmatpush.bf16.msra.mxu0 0
    %570 = vmatpush.bf16.msra.mxu0 0
    %571 = vmatpush.bf16.msra.mxu0 %v512
    %572 = vmatpush.bf16.msra.mxu0 %v486
    %573 = vmatpush.bf16.msra.mxu0 %v484
    %574 = vmatmul.bf16.gmra.mxu0 %v499
    %v575 = vpop.f32.mrf.mxu0
    %v576 = vadd.f32 %v495, %v575
    %v577 = vpop.f32.mrf.mxu0
    %578 = vdwg.mxu0
    %vm579 = vcmp.gt.f32.partialorder %v524, 0.0
    %vm580 = vcmp.gt.f32.partialorder %v537, 0.0
    %vm581 = vcmp.gt.f32.partialorder %v550, 0.0
    %vm582 = vcmp.gt.f32.partialorder %v563, 0.0
    %vm583 = vcmp.gt.f32.partialorder %v576, 0.0
    %v584 = vmul.f32 %v524, 0.1
    %v585 = vmul.f32 %v537, 0.1
    %v586 = vmul.f32 %v550, 0.1
    %v587 = vmul.f32 %v563, 0.1
    %v588 = vmul.f32 %v576, 0.1
    %v589 = vsel %vm579, %v524, %v584
    %v590 = vsel %vm580, %v537, %v585
    %v591 = vsel %vm581, %v550, %v586
    %v592 = vsel %vm582, %v563, %v587
    %v593 = vsel %vm583, %v576, %v588
    %594 = vst [vmem:[#allocation5] sm:$0xff] %v589
    %595 = vst [vmem:[#allocation5 + $0x8] sm:$0xff] %v590
    %596 = vst [vmem:[#allocation5 + $0x10] sm:$0xff] %v591
    %597 = vst [vmem:[#allocation5 + $0x18] sm:$0xff] %v592
    %598 = vst [vmem:[#allocation5 + $0x20] sm:$0xff] %v593
    // Predicated region
    $region18: #{tpu_custom_call.1} parent=1 // pred_check
      _
    $region19: #{tpu_custom_call.1} parent=1 // pred_check_branch
      %600 = sbr.rel (0) target = $region21
    $region20: #{tpu_custom_call.1} parent=1 // pred_region
      %602 = vsyncadd [#allocation4], 0
      %s604 = sshll.u32 [#allocation5], 4
      %s605 = int_to_ptr.vmem [resolvable:$true] %s604
      %s606 = sshll.u32 %s3, 4
      %s607 = int_to_ptr.hbm [resolvable:$true] %s606
      %609 = dma.vmem_to_hbm [thread:$0]  %s605, 640, %s607, [#allocation4]
    $region21: #{tpu_custom_call.1} parent=1 // pred_fallthru
      _
    // Predicated region
    $region22: #{tpu_custom_call.1} parent=1 // pred_check
      _
    $region23: #{tpu_custom_call.1} parent=1 // pred_check_branch
      %611 = sbr.rel (0) target = $region25
    $region24: #{tpu_custom_call.1} parent=1 // pred_region
      %613 = dma.done [#allocation4], 640
    $region25: #{tpu_custom_call.1} parent=1 // pred_fallthru
      _
    %614 = vsyncpa [#allocation3], 1
    %615 = vsyncpa [#allocation4], 1

</llo_original>
